<compile_context>
chip_gen: v5e
topology: v5e:2x2
jax: 0.10.0
libtpu: 0.0.40
codegen_flags: <defaults>
</compile_context>

<pallas_src>
import functools

import numpy as np
import jax
import jax.numpy as jnp
from jax import lax
from jax.experimental import pallas as pl
from jax.experimental.pallas import tpu as pltpu


# ----------------------------------------------------------------------------
# Nesting masks (plain numpy glue — identical to the PyTorch module helpers).
# ----------------------------------------------------------------------------
def get_joint_nesting_masks(weights, set_first_mode_const=False):
    vector_mask = list(np.cumsum(list(weights)[::-1])[::-1])
    if set_first_mode_const:
        vector_mask = [vector_mask[0]] + vector_mask
    vector_mask = np.asarray(vector_mask, dtype=np.float32)
    matrix_mask = np.minimum(vector_mask[:, None], vector_mask[None, :]).astype(np.float32)
    return vector_mask, matrix_mask


def get_sequential_nesting_masks(L, set_first_mode_const=False):
    if set_first_mode_const:
        L += 1
    vector_mask = np.ones(L, dtype=np.float32)
    matrix_mask = np.triu(np.ones((L, L), dtype=np.float32))
    return vector_mask, matrix_mask


# ----------------------------------------------------------------------------
# small helpers
# ----------------------------------------------------------------------------
def _round_up(x, m):
    return ((x + m - 1) // m) * m


def _pick_tm(B, target=512):
    """Pick a batch tile: ~target rows (near HBM roofline), minimal padding,
    multiple of 8 (sublane)."""
    B8 = _round_up(max(B, 1), 8)
    if B8 <= target:
        return B8
    nb = -(-B8 // target)                 # ceil
    return _round_up(-(-B8 // nb), 8)     # ceil(B8/nb) rounded to sublane


_DN_BATCH_CONTRACT = (((0,), (0,)), ((), ()))  # einsum('bl,bm->lm', a, b)


# ----------------------------------------------------------------------------
# Kernel 1: linear model forward  f = x @ W + b   (NestedLoRA.forward hot path)
#   x tile (tm, D) bf16, W (D, Lp) bf16 resident, b (1, Lp) f32 resident.
# ----------------------------------------------------------------------------
def _linear_kernel(x_ref, w_ref, b_ref, o_ref):
    o_ref[...] = (
        jnp.dot(x_ref[...], w_ref[...], preferred_element_type=jnp.float32)
        + b_ref[...]
    )


def linear_forward(x, w_p_bf16, b_p_f32, L, tm=None):
    B, D = x.shape
    Lp = w_p_bf16.shape[1]
    tm = _pick_tm(B) if tm is None else tm
    Bp = _round_up(B, tm)
    x_b = x.astype(jnp.bfloat16)
    if Bp != B:
        x_b = jnp.pad(x_b, ((0, Bp - B), (0, 0)))
    nb = Bp // tm

    f_p = pl.pallas_call(
        _linear_kernel,
        out_shape=jax.ShapeDtypeStruct((Bp, Lp), jnp.float32),
        grid=(nb,),
        in_specs=[
            pl.BlockSpec((tm, D), lambda i: (i, 0)),
            pl.BlockSpec((D, Lp), lambda i: (0, 0)),
            pl.BlockSpec((1, Lp), lambda i: (0, 0)),
        ],
        out_specs=pl.BlockSpec((tm, Lp), lambda i: (i, 0)),
        compiler_params=pltpu.CompilerParams(dimension_semantics=("parallel",)),
    )(x_b, w_p_bf16, b_p_f32)
    return f_p[:B, :L]


# ----------------------------------------------------------------------------
# Kernel 2: NestedLoRALossFunctionEVD.forward, tiled over B with accumulators.
#   f1 / f2 are the two halves of f, selected in-kernel via row masks
#   (no duplicate HBM reads).  Padded rows (>= B) are zero, so they vanish.
# ----------------------------------------------------------------------------
def _evd_loss_kernel(B, B1, B2, tm,
                     f_ref, tf_ref, vmask_ref, mmask_ref,
                     loss_ref, lam1_ref, lam2_ref,
                     lam1_acc, lam2_acc, op_acc):
    i = pl.program_id(0)

    @pl.when(i == 0)
    def _init():
        lam1_acc[...] = jnp.zeros_like(lam1_acc)
        lam2_acc[...] = jnp.zeros_like(lam2_acc)
        op_acc[...] = jnp.zeros_like(op_acc)

    f = f_ref[...]     # (tm, Lp) f32, zero-padded rows beyond B
    tf = tf_ref[...]   # (tm, Lp) f32

    row = lax.broadcasted_iota(jnp.int32, (tm, 1), 0) + i * tm
    m1 = (row < B1).astype(jnp.float32)
    m2 = 1.0 - m1      # rows >= B are zero rows -> contribute nothing

    f_b = f.astype(jnp.bfloat16)
    lam1_acc[...] += lax.dot_general((m1 * f).astype(jnp.bfloat16), f_b,
                                     _DN_BATCH_CONTRACT,
                                     preferred_element_type=jnp.float32)
    lam2_acc[...] += lax.dot_general((m2 * f).astype(jnp.bfloat16), f_b,
                                     _DN_BATCH_CONTRACT,
                                     preferred_element_type=jnp.float32)
    # per-column partial sums; vmask multiply + cross-lane reduce deferred to end
    op_acc[...] += jnp.sum(f * tf, axis=0, keepdims=True)

    @pl.when(i == pl.num_programs(0) - 1)
    def _finalize():
        lam1 = lam1_acc[...] * (1.0 / B1)
        lam2 = lam2_acc[...] * (1.0 / B2)
        lam1_ref[...] = lam1
        lam2_ref[...] = lam2
        loss_operator = (-2.0 / B) * jnp.sum(vmask_ref[...] * op_acc[...])
        loss_metric = jnp.sum(mmask_ref[...] * lam1 * lam2)
        loss_ref[0, 0] = loss_operator + loss_metric


def nestedlora_evd_loss(f, Tf, vmask_p, mmask_p, B1=None, tm=None):
    B, L = f.shape
    Lp = vmask_p.shape[1]
    B1 = (B + 1) // 2 if B1 is None else B1   # torch.chunk(f, 2) split point
    B2 = B - B1
    tm = _pick_tm(B) if tm is None else tm
    Bp = _round_up(B, tm)
    f_p = jnp.pad(f, ((0, Bp - B), (0, Lp - L)))
    tf_p = jnp.pad(Tf, ((0, Bp - B), (0, Lp - L)))
    nb = Bp // tm

    kernel = functools.partial(_evd_loss_kernel, B, B1, B2, tm)
    loss, lam1_p, lam2_p = pl.pallas_call(
        kernel,
        out_shape=(
            jax.ShapeDtypeStruct((1, 1), jnp.float32),
            jax.ShapeDtypeStruct((Lp, Lp), jnp.float32),
            jax.ShapeDtypeStruct((Lp, Lp), jnp.float32),
        ),
        grid=(nb,),
        in_specs=[
            pl.BlockSpec((tm, Lp), lambda i: (i, 0)),
            pl.BlockSpec((tm, Lp), lambda i: (i, 0)),
            pl.BlockSpec((1, Lp), lambda i: (0, 0)),
            pl.BlockSpec((Lp, Lp), lambda i: (0, 0)),
        ],
        out_specs=(
            pl.BlockSpec((1, 1), lambda i: (0, 0)),
            pl.BlockSpec((Lp, Lp), lambda i: (0, 0)),
            pl.BlockSpec((Lp, Lp), lambda i: (0, 0)),
        ),
        scratch_shapes=[
            pltpu.VMEM((Lp, Lp), jnp.float32),
            pltpu.VMEM((Lp, Lp), jnp.float32),
            pltpu.VMEM((1, Lp), jnp.float32),
        ],
        compiler_params=pltpu.CompilerParams(dimension_semantics=("arbitrary",)),
    )(f_p, tf_p, vmask_p, mmask_p)
    return loss[0, 0], lam1_p[:L, :L], lam2_p[:L, :L]


# ----------------------------------------------------------------------------
# Kernel 3: fused  forward + linear operator (Tf = f @ A) + EVD loss.
# Single HBM pass over x; f and Tf are written once and never re-read.
# ----------------------------------------------------------------------------
def _fused_kernel(B, B1, B2, tm, has_pad,
                  x_ref, w_ref, b_ref, a_ref, vmask_ref, mmask_ref,
                  f_ref, tf_ref, loss_ref, lam1_ref, lam2_ref,
                  lam1_acc, lam2_acc, op_acc):
    i = pl.program_id(0)

    @pl.when(i == 0)
    def _init():
        lam1_acc[...] = jnp.zeros_like(lam1_acc)
        lam2_acc[...] = jnp.zeros_like(lam2_acc)
        op_acc[...] = jnp.zeros_like(op_acc)

    row = lax.broadcasted_iota(jnp.int32, (tm, 1), 0) + i * tm

    # f = (x @ W + b); padded batch rows are zeroed so they don't pollute the
    # loss reductions (only emitted when the batch actually needed padding).
    f = (jnp.dot(x_ref[...], w_ref[...], preferred_element_type=jnp.float32)
         + b_ref[...])
    if has_pad:
        f = f * (row < B).astype(jnp.float32)
    f_b = f.astype(jnp.bfloat16)
    tf = jnp.dot(f_b, a_ref[...], preferred_element_type=jnp.float32)

    f_ref[...] = f
    tf_ref[...] = tf

    m1 = (row < B1).astype(jnp.float32)
    m2 = 1.0 - m1      # padded rows already zero in f
    lam1_acc[...] += lax.dot_general((m1 * f).astype(jnp.bfloat16), f_b,
                                     _DN_BATCH_CONTRACT,
                                     preferred_element_type=jnp.float32)
    lam2_acc[...] += lax.dot_general((m2 * f).astype(jnp.bfloat16), f_b,
                                     _DN_BATCH_CONTRACT,
                                     preferred_element_type=jnp.float32)
    op_acc[...] += jnp.sum(f * tf, axis=0, keepdims=True)

    @pl.when(i == pl.num_programs(0) - 1)
    def _finalize():
        lam1 = lam1_acc[...] * (1.0 / B1)
        lam2 = lam2_acc[...] * (1.0 / B2)
        lam1_ref[...] = lam1
        lam2_ref[...] = lam2
        loss_operator = (-2.0 / B) * jnp.sum(vmask_ref[...] * op_acc[...])
        loss_metric = jnp.sum(mmask_ref[...] * lam1 * lam2)
        loss_ref[0, 0] = loss_operator + loss_metric


def fused_forward_operator_loss(x, w_p_bf16, b_p_f32, a_p_bf16, vmask_p, mmask_p,
                                L, B1=None, tm=None):
    B, D = x.shape
    Lp = w_p_bf16.shape[1]
    B1 = (B + 1) // 2 if B1 is None else B1
    B2 = B - B1
    tm = _pick_tm(B) if tm is None else tm
    Bp = _round_up(B, tm)
    x_b = x.astype(jnp.bfloat16)
    if Bp != B:
        x_b = jnp.pad(x_b, ((0, Bp - B), (0, 0)))
    nb = Bp // tm

    kernel = functools.partial(_fused_kernel, B, B1, B2, tm, Bp != B)
    f_p, tf_p, loss, lam1_p, lam2_p = pl.pallas_call(
        kernel,
        out_shape=(
            jax.ShapeDtypeStruct((Bp, Lp), jnp.float32),
            jax.ShapeDtypeStruct((Bp, Lp), jnp.float32),
            jax.ShapeDtypeStruct((1, 1), jnp.float32),
            jax.ShapeDtypeStruct((Lp, Lp), jnp.float32),
            jax.ShapeDtypeStruct((Lp, Lp), jnp.float32),
        ),
        grid=(nb,),
        in_specs=[
            pl.BlockSpec((tm, D), lambda i: (i, 0)),
            pl.BlockSpec((D, Lp), lambda i: (0, 0)),
            pl.BlockSpec((1, Lp), lambda i: (0, 0)),
            pl.BlockSpec((Lp, Lp), lambda i: (0, 0)),
            pl.BlockSpec((1, Lp), lambda i: (0, 0)),
            pl.BlockSpec((Lp, Lp), lambda i: (0, 0)),
        ],
        out_specs=(
            pl.BlockSpec((tm, Lp), lambda i: (i, 0)),
            pl.BlockSpec((tm, Lp), lambda i: (i, 0)),
            pl.BlockSpec((1, 1), lambda i: (0, 0)),
            pl.BlockSpec((Lp, Lp), lambda i: (0, 0)),
            pl.BlockSpec((Lp, Lp), lambda i: (0, 0)),
        ),
        scratch_shapes=[
            pltpu.VMEM((Lp, Lp), jnp.float32),
            pltpu.VMEM((Lp, Lp), jnp.float32),
            pltpu.VMEM((1, Lp), jnp.float32),
        ],
        compiler_params=pltpu.CompilerParams(dimension_semantics=("arbitrary",)),
    )(x_b, w_p_bf16, b_p_f32, a_p_bf16, vmask_p, mmask_p)
    return loss[0, 0], lam1_p[:L, :L], lam2_p[:L, :L], f_p[:B, :L], tf_p[:B, :L]


# ----------------------------------------------------------------------------
# NestedLoRA wrapper (JAX / Pallas version)
# ----------------------------------------------------------------------------
class NestedLoRAPallas:
    def __init__(self, neigs, d_in, step=1, sequential=False, key=None, tm=None):
        self.neigs = neigs
        self.tm = tm
        self.Lp = _round_up(max(neigs, 1), 128)   # lane-dense padded width

        if sequential:
            vmask, mmask = get_sequential_nesting_masks(neigs)
        else:
            end_indices = list(range(step, neigs + 1, step))
            if neigs not in end_indices:
                end_indices.append(neigs)
            step_weights = np.zeros(neigs)
            step_weights[np.array(end_indices) - 1] = 1.0
            step_weights = step_weights / step_weights.sum()
            vmask, mmask = get_joint_nesting_masks(step_weights)

        L, Lp = neigs, self.Lp
        self.vector_mask = jnp.asarray(vmask, dtype=jnp.float32)
        self.matrix_mask = jnp.asarray(mmask, dtype=jnp.float32)
        vmask_p = np.zeros((1, Lp), np.float32); vmask_p[0, :L] = vmask
        mmask_p = np.zeros((Lp, Lp), np.float32); mmask_p[:L, :L] = mmask
        self.vmask_p = jnp.asarray(vmask_p)
        self.mmask_p = jnp.asarray(mmask_p)

        # deterministic synthetic "model": a single linear layer  x -> f
        kw, kb = jax.random.split(key)
        W = (jax.random.normal(kw, (d_in, L), dtype=jnp.float32)
             / np.sqrt(d_in)).astype(jnp.float32)
        b = 0.01 * jax.random.normal(kb, (L,), dtype=jnp.float32)
        self.W, self.b = W, b
        # padded, bf16 params (MXU-native operands, lane-dense columns)
        self.W_p = jnp.zeros((d_in, Lp), jnp.float32).at[:, :L].set(W).astype(jnp.bfloat16)
        self.b_p = jnp.zeros((1, Lp), jnp.float32).at[0, :L].set(b)

    def forward(self, x):
        # TODO(synk): eigenvalue-based column sorting (self.sort_indices) is a
        # training-time gather; not part of the kernel hot path.
        return linear_forward(x, self.W_p, self.b_p, self.neigs, tm=self.tm)

    def compute_loss(self, f, Tf, B1=None):
        # TODO(synk): split_batch=True path (f1/f2 NOT halves of one f) would
        # need a second tiled input; not implemented here.
        return nestedlora_evd_loss(f, Tf, self.vmask_p, self.mmask_p, B1=B1, tm=self.tm)

    def compute_loss_linear_operator(self, x, A, B1=None):
        """Fused forward + Tf = f@A + EVD loss (single HBM pass over x)."""
        L, Lp = self.neigs, self.Lp
        a_p = (jnp.zeros((Lp, Lp), jnp.float32).at[:L, :L].set(A)).astype(jnp.bfloat16)
        return fused_forward_operator_loss(x, self.W_p, self.b_p, a_p,
                                           self.vmask_p, self.mmask_p, L,
                                           B1=B1, tm=self.tm)


# ----------------------------------------------------------------------------
# Demo + correctness check (precision-matched pure-JAX reference)
# ----------------------------------------------------------------------------
if __name__ == "__main__":
    key = jax.random.PRNGKey(0)
    k_model, k_x, k_op = jax.random.split(key, 3)

    B, D, NEIGS = 32, 32, 8
    TM = 8   # tiny tile so the small demo exercises the multi-tile pipelined path
    module = NestedLoRAPallas(neigs=NEIGS, d_in=D, step=1, key=k_model, tm=TM)

    x = jax.random.normal(k_x, (B, D), dtype=jnp.float32)
    A = jax.random.normal(k_op, (NEIGS, NEIGS), dtype=jnp.float32) / np.sqrt(NEIGS)

    # ---- path A: module API (separate kernels; operator applied as plain-JAX glue)
    f = module.forward(x)
    Tf = jnp.dot(f.astype(jnp.bfloat16), A.astype(jnp.bfloat16),
                 preferred_element_type=jnp.float32)
    loss_a, lam1_a, lam2_a = module.compute_loss(f, Tf)

    # ---- path B: fully fused forward + operator + loss
    loss_f, lam1_f, lam2_f, f_fused, Tf_fused = module.compute_loss_linear_operator(x, A)

    jax.block_until_ready((f, Tf, loss_a, lam1_a, lam2_a,
                           loss_f, lam1_f, lam2_f, f_fused, Tf_fused))

    # ---- pure-JAX reference mirroring the PyTorch einsums with the same
    #      precision policy (bf16 MXU operands, f32 accumulation)
    f_ref = jnp.dot(x.astype(jnp.bfloat16), module.W.astype(jnp.bfloat16),
                    preferred_element_type=jnp.float32) + module.b
    Tf_ref = jnp.dot(f_ref.astype(jnp.bfloat16), A.astype(jnp.bfloat16),
                     preferred_element_type=jnp.float32)
    B1 = (B + 1) // 2
    f1_ref, f2_ref = f_ref[:B1], f_ref[B1:]
    lam1_ref = lax.dot_general(f1_ref.astype(jnp.bfloat16), f1_ref.astype(jnp.bfloat16),
                               _DN_BATCH_CONTRACT, preferred_element_type=jnp.float32) / B1
    lam2_ref = lax.dot_general(f2_ref.astype(jnp.bfloat16), f2_ref.astype(jnp.bfloat16),
                               _DN_BATCH_CONTRACT, preferred_element_type=jnp.float32) / (B - B1)
    metric_ref = jnp.sum(module.matrix_mask * lam1_ref * lam2_ref)
    op_ref = -2.0 * jnp.mean(jnp.einsum('l,bl,bl->b', module.vector_mask, f_ref, Tf_ref))
    loss_ref = op_ref + metric_ref

    tol = dict(rtol=2e-3, atol=2e-3)
    np.testing.assert_allclose(np.asarray(f), np.asarray(f_ref), **tol)
    np.testing.assert_allclose(np.asarray(loss_a), np.asarray(loss_ref), **tol)
    np.testing.assert_allclose(np.asarray(lam1_a), np.asarray(lam1_ref), **tol)
    np.testing.assert_allclose(np.asarray(lam2_a), np.asarray(lam2_ref), **tol)
    # fused path matches the separate-kernel path
    np.testing.assert_allclose(np.asarray(loss_f), np.asarray(loss_a), **tol)
    np.testing.assert_allclose(np.asarray(lam1_f), np.asarray(lam1_a), **tol)
    np.testing.assert_allclose(np.asarray(lam2_f), np.asarray(lam2_a), **tol)
    np.testing.assert_allclose(np.asarray(f_fused), np.asarray(f), **tol)
    np.testing.assert_allclose(np.asarray(Tf_fused), np.asarray(Tf), **tol)

    print("KERNEL_OK")
</pallas_src>

<mosaic_0001>
module attributes {stable_mosaic.version = 11 : i64} {
  func.func @_linear_kernel(%arg0: i32, %arg1: memref<8x32xbf16, #tpu.memory_space<vmem>>, %arg2: memref<32x128xbf16, #tpu.memory_space<vmem>>, %arg3: memref<1x128xf32, #tpu.memory_space<vmem>>, %arg4: memref<8x128xf32, #tpu.memory_space<vmem>>) attributes {dimension_semantics = [#tpu.dimension_semantics<parallel>], iteration_bounds = array<i64: 4>, scalar_prefetch = 0 : i64, scratch_operands = 0 : i64, tpu.core_type = #tpu.core_type<tc>, window_params = [{transform_indices = @transform_0, window_bounds = array<i64: 8, 32>}, {pipeline_mode = #tpu.pipeline_mode<synchronous>, transform_indices = @transform_1, window_bounds = array<i64: 32, 128>}, {pipeline_mode = #tpu.pipeline_mode<synchronous>, transform_indices = @transform_2, window_bounds = array<i64: 1, 128>}, {transform_indices = @transform_3, window_bounds = array<i64: 8, 128>}]} {
    %c0 = arith.constant 0 : index
    %c0_0 = arith.constant 0 : index
    %0 = vector.load %arg1[%c0, %c0_0] : memref<8x32xbf16, #tpu.memory_space<vmem>>, vector<8x32xbf16>
    %c0_1 = arith.constant 0 : index
    %c0_2 = arith.constant 0 : index
    %1 = vector.load %arg2[%c0_1, %c0_2] : memref<32x128xbf16, #tpu.memory_space<vmem>>, vector<32x128xbf16>
    %cst = arith.constant dense<0.000000e+00> : vector<8x128xf32>
    %2 = tpu.matmul %0, %1, %cst {dimension_numbers = #tpu.dot_dimension_numbers<[1], [0], [0], [1], [0, 0, 1, 1], [], []>} : vector<8x32xbf16>, vector<32x128xbf16>, vector<8x128xf32> -> vector<8x128xf32>
    %c0_3 = arith.constant 0 : index
    %c0_4 = arith.constant 0 : index
    %3 = vector.load %arg3[%c0_3, %c0_4] : memref<1x128xf32, #tpu.memory_space<vmem>>, vector<1x128xf32>
    %4 = vector.broadcast %3 : vector<1x128xf32> to vector<8x128xf32>
    %5 = arith.addf %2, %4 : vector<8x128xf32>
    %c0_5 = arith.constant 0 : index
    %c0_6 = arith.constant 0 : index
    %6 = vector.load %arg4[%c0_5, %c0_6] : memref<8x128xf32, #tpu.memory_space<vmem>>, vector<8x128xf32>
    tpu.vector_store %arg4[%c0_5, %c0_6], %5 {strides = array<i32>} : memref<8x128xf32, #tpu.memory_space<vmem>>, vector<8x128xf32>,
    return
  }
  func.func @transform_0(%arg0: i32) -> (i32, i32) {
    %c0_i32 = arith.constant 0 : i32
    %c0_i32_0 = arith.constant 0 : i32
    return %arg0, %c0_i32 : i32, i32
  }
  func.func @transform_1(%arg0: i32) -> (i32, i32) {
    %c0_i32 = arith.constant 0 : i32
    %c0_i32_0 = arith.constant 0 : i32
    %c0_i32_1 = arith.constant 0 : i32
    return %c0_i32, %c0_i32_0 : i32, i32
  }
  func.func @transform_2(%arg0: i32) -> (i32, i32) {
    %c0_i32 = arith.constant 0 : i32
    %c0_i32_0 = arith.constant 0 : i32
    %c0_i32_1 = arith.constant 0 : i32
    return %c0_i32, %c0_i32_0 : i32, i32
  }
  func.func @transform_3(%arg0: i32) -> (i32, i32) {
    %c0_i32 = arith.constant 0 : i32
    %c0_i32_0 = arith.constant 0 : i32
    return %arg0, %c0_i32 : i32, i32
  }
}

</mosaic_0001>

<llo_original>
// kernel: tpu_custom_call.1
$region0: #{tpu_custom_call.1}
  #allocation0 [shape = 'u32[]', space=smem, size = 0x4, offset = 0x4, fixed_abs, tag = 'smem constant byte address 0x4 - core index']
  #allocation1 [shape = 'u32[72,128]{1,0:T(1,128)}', space=vmem, size = 0x9000, scoped, tag = 'internal scratch']
  %s0 = inlined_call_operand.hbm [shape: bf16[32,32], index: 0, kind: input, shape index: {}]
  %s1 = inlined_call_operand.hbm [shape: bf16[32,128], index: 1, kind: input, shape index: {}]
  %s2 = inlined_call_operand.vmem [shape: f32[1,128], index: 2, kind: input, shape index: {}]
  %s3 = inlined_call_operand.hbm [shape: f32[32,128], index: 3, kind: output, shape index: {}]
  %s4 = sld [smem:[#allocation0]]
  $region53: #{tpu_custom_call.1} parent=0
    _
  %s6 = ssub.s32 1, %s4
  %s7 = scalar_select 0, %s6, %s4
  $region1: #{tpu_custom_call.1} parent=0
    #allocation2 [shape = 'u8[4096]{0}', space=vmem, size = 0x1000, scoped, tag = 'input window, operand 0']
    #allocation3 [shape = 's32[2]{0}', space=sflag, size = 0x8, scoped, tag = 'scoped memory for tpu_custom_call.1']
    #allocation4 [shape = 's32[2]{0}', space=sflag, size = 0x8, scoped, tag = 'scoped memory for tpu_custom_call.1']
    #allocation5 [shape = 'u8[8192]{0}', space=vmem, size = 0x2000, scoped, tag = 'input window, operand 1, single buffered']
    #allocation6 [shape = 's32[1]{0}', space=sflag, size = 0x4, scoped, tag = 'scoped memory for tpu_custom_call.1']
    #allocation7 [shape = 'u8[8192]{0}', space=vmem, size = 0x2000, scoped, tag = 'output window, operand 0']
    %8 = vsyncpa [#allocation3], 0
    %s9 = scalar_lea.sflag [#allocation3], 1
    %10 = vsyncpa %s9, 0
    %11 = vsyncpa [#allocation6], 0
    %12 = vsyncpa [#allocation4], 0
    %s13 = scalar_lea.sflag [#allocation4], 1
    %14 = vsyncpa %s13, 0
    loop: start=0, step=1, limit=6
    $region2: #{tpu_custom_call.1} parent=1 // loop_pre_header
      _
    $region3: #{tpu_custom_call.1} parent=1 // loop_header
      %s16 = sphi 0, %s20
      %p17 = scmp.ge.s32.totalorder %s16, 6
      %s26 = sphi 0, %s28
      %s29 = sphi 0, %s26
      %s30 = sphi 0, %s29
      %s46 = sphi 0, %s30
      %s50 = sphi 0, %s50
      %s52 = sphi 0, %s50
      %s53 = sphi 0, %s52
      %s67 = sphi 0, %s53
      %s71 = sphi 0, %s71
      %s73 = sphi 0, %s71
      %s74 = sphi 0, %s73
      %s88 = sphi 0, %s74
      %s94 = sphi 0, %s96
      %s97 = sphi 0, %s94
      %s98 = sphi 0, %s97
      %s114 = sphi 0, %s98
    $region4: #{tpu_custom_call.1} parent=1 // loop_header_branch
      %19 = sbr.rel (%p17) target = $region8
    $region5: #{tpu_custom_call.1} parent=1 // loop_body
      %s21 = ssub.s32 %s16, 1
      %s22 = ssub.s32 %s16, 2
      %s23 = sadd.s32 %s16, 1
      %s24 = ssub.s32 %s16, %s23
      %p25 = scmp.eq.s32.totalorder %s24, 0
      %s27 = sadd.s32 %s26, 1
      %s28 = scalar_select %p25, %s26, %s27
      %p31 = pneg %p25
      %p32 = scmp.eq.s32.totalorder %s16, 3
      %p33 = por %p31, %p32
      %p34 = scmp.ne.s32.totalorder %s26, %s29
      %p35 = scmp.eq.s32.totalorder %s16, 0
      %p36 = por %p34, %p35
      %p37 = scmp.ne.s32.totalorder %s26, %s29
      %p38 = scmp.eq.s32.totalorder %s21, 3
      %p39 = por %p37, %p38
      %p40 = scmp.ne.s32.totalorder %s29, %s30
      %p41 = scmp.eq.s32.totalorder %s21, 0
      %p42 = por %p40, %p41
      %p43 = scmp.ne.s32.totalorder %s29, %s30
      %p44 = scmp.eq.s32.totalorder %s22, 3
      %p45 = por %p43, %p44
      %p47 = scmp.ne.s32.totalorder %s30, %s46
      %p48 = scmp.eq.s32.totalorder %s22, 0
      %p49 = por %p47, %p48
      %s51 = sadd.s32 %s50, 1
      %p54 = scmp.eq.s32.totalorder %s16, 3
      %p55 = scmp.ne.s32.totalorder %s50, %s52
      %p56 = scmp.eq.s32.totalorder %s16, 0
      %p57 = por %p55, %p56
      %p58 = scmp.ne.s32.totalorder %s50, %s52
      %p59 = scmp.eq.s32.totalorder %s21, 3
      %p60 = por %p58, %p59
      %p61 = scmp.ne.s32.totalorder %s52, %s53
      %p62 = scmp.eq.s32.totalorder %s21, 0
      %p63 = por %p61, %p62
      %p64 = scmp.ne.s32.totalorder %s52, %s53
      %p65 = scmp.eq.s32.totalorder %s22, 3
      %p66 = por %p64, %p65
      %p68 = scmp.ne.s32.totalorder %s53, %s67
      %p69 = scmp.eq.s32.totalorder %s22, 0
      %p70 = por %p68, %p69
      %s72 = sadd.s32 %s71, 1
      %p75 = scmp.eq.s32.totalorder %s16, 3
      %p76 = scmp.ne.s32.totalorder %s71, %s73
      %p77 = scmp.eq.s32.totalorder %s16, 0
      %p78 = por %p76, %p77
      %p79 = scmp.ne.s32.totalorder %s71, %s73
      %p80 = scmp.eq.s32.totalorder %s21, 3
      %p81 = por %p79, %p80
      %p82 = scmp.ne.s32.totalorder %s73, %s74
      %p83 = scmp.eq.s32.totalorder %s21, 0
      %p84 = por %p82, %p83
      %p85 = scmp.ne.s32.totalorder %s73, %s74
      %p86 = scmp.eq.s32.totalorder %s22, 3
      %p87 = por %p85, %p86
      %p89 = scmp.ne.s32.totalorder %s74, %s88
      %p90 = scmp.eq.s32.totalorder %s22, 0
      %p91 = por %p89, %p90
      %s92 = ssub.s32 %s16, %s23
      %p93 = scmp.eq.s32.totalorder %s92, 0
      %s95 = sadd.s32 %s94, 1
      %s96 = scalar_select %p93, %s94, %s95
      %p99 = pneg %p93
      %p100 = scmp.eq.s32.totalorder %s16, 3
      %p101 = por %p99, %p100
      %p102 = scmp.ne.s32.totalorder %s94, %s97
      %p103 = scmp.eq.s32.totalorder %s16, 0
      %p104 = por %p102, %p103
      %p105 = scmp.ne.s32.totalorder %s94, %s97
      %p106 = scmp.eq.s32.totalorder %s21, 3
      %p107 = por %p105, %p106
      %p108 = scmp.ne.s32.totalorder %s97, %s98
      %p109 = scmp.eq.s32.totalorder %s21, 0
      %p110 = por %p108, %p109
      %p111 = scmp.ne.s32.totalorder %s97, %s98
      %p112 = scmp.eq.s32.totalorder %s22, 3
      %p113 = por %p111, %p112
      %p115 = scmp.ne.s32.totalorder %s98, %s114
      %p116 = scmp.eq.s32.totalorder %s22, 0
      %p117 = por %p115, %p116
      %p118 = scmp.le.s32.totalorder 1, %s16
      %p119 = scmp.lt.s32.totalorder %s16, 5
      %p120 = pnand %p118, %p119
      %p121 = pneg %p120
      // Predicated region
      $region9: #{tpu_custom_call.1} parent=5 // pred_check
        _
      $region10: #{tpu_custom_call.1} parent=5 // pred_check_branch
        %123 = sbr.rel (%p120) target = $region12
      $region11: #{tpu_custom_call.1} parent=5 // pred_region
        %s124 = ssub.s32 %s16, 1
        // Predicated region
        $region13: #{tpu_custom_call.1} parent=11 // pred_check
          %p125 = pneg %p63
        $region14: #{tpu_custom_call.1} parent=11 // pred_check_branch
          %127 = sbr.rel (%p125) target = $region16
        $region15: #{tpu_custom_call.1} parent=11 // pred_region
          %129 = vsyncadd [#allocation6], 0
          %s130 = sshll.u32 %s1, 4
          %s131 = int_to_ptr.hbm [resolvable:$true] %s130
          %s132 = sshll.u32 [#allocation5], 4
          %s133 = int_to_ptr.vmem [resolvable:$true] %s132
          %138 = dma.hbm_to_vmem [thread:$0]  %s131, 256, %s133, [#allocation6], 64, 64, 4
        $region16: #{tpu_custom_call.1} parent=11 // pred_fallthru
          _
        // Predicated region
        $region17: #{tpu_custom_call.1} parent=11 // pred_check
          %p139 = pneg %p84
        $region18: #{tpu_custom_call.1} parent=11 // pred_check_branch
          %141 = sbr.rel (%p139) target = $region20
        $region19: #{tpu_custom_call.1} parent=11 // pred_region
          _
        $region20: #{tpu_custom_call.1} parent=11 // pred_fallthru
          _
      $region12: #{tpu_custom_call.1} parent=5 // pred_fallthru
        _
      %p142 = scmp.lt.s32.totalorder %s16, 4
      // Predicated region
      $region21: #{tpu_custom_call.1} parent=5 // pred_check
        %p143 = pneg %p142
      $region22: #{tpu_custom_call.1} parent=5 // pred_check_branch
        %145 = sbr.rel (%p143) target = $region24
      $region23: #{tpu_custom_call.1} parent=5 // pred_region
        // Predicated region
        $region25: #{tpu_custom_call.1} parent=23 // pred_check
          %p146 = pneg %p36
        $region26: #{tpu_custom_call.1} parent=23 // pred_check_branch
          %148 = sbr.rel (%p146) target = $region28
        $region27: #{tpu_custom_call.1} parent=23 // pred_region
          %s149 = sand.u32 %s26, 1
          %s150 = scalar_lea.sflag [#allocation3], %s149
          %s151 = sand.u32 %s26, 1
          %s152 = smul.addr %s151, 4
          %s153 = scalar_lea.vmem [#allocation2], %s152
          %155 = vsyncadd %s150, 0
          %s156 = smul.addr %s16, 4
          %s157 = scalar_lea.hbm %s0, %s156
          %s159 = sshll.u32 %s157, 4
          %s160 = int_to_ptr.hbm [resolvable:$true] %s159
          %s161 = sshll.u32 %s153, 4
          %s162 = int_to_ptr.vmem [resolvable:$true] %s161
          %164 = dma.hbm_to_vmem [thread:$0]  %s160, 64, %s162, %s150
        $region28: #{tpu_custom_call.1} parent=23 // pred_fallthru
          _
      $region24: #{tpu_custom_call.1} parent=5 // pred_fallthru
        _
      %p165 = scmp.le.s32.totalorder 1, %s16
      %p166 = scmp.lt.s32.totalorder %s16, 5
      %p167 = pnand %p165, %p166
      %p168 = pneg %p167
      // Predicated region
      $region29: #{tpu_custom_call.1} parent=5 // pred_check
        _
      $region30: #{tpu_custom_call.1} parent=5 // pred_check_branch
        %170 = sbr.rel (%p167) target = $region32
      $region31: #{tpu_custom_call.1} parent=5 // pred_region
        %s171 = ssub.s32 %s16, 1
        %s172 = sand.u32 %s29, 1
        %s173 = scalar_lea.sflag [#allocation3], %s172
        %s174 = sand.u32 %s29, 1
        %s175 = smul.addr %s174, 4
        %s176 = scalar_lea.vmem [#allocation2], %s175
        // Predicated region
        $region33: #{tpu_custom_call.1} parent=31 // pred_check
          %p177 = pneg %p42
        $region34: #{tpu_custom_call.1} parent=31 // pred_check_branch
          %179 = sbr.rel (%p177) target = $region36
        $region35: #{tpu_custom_call.1} parent=31 // pred_region
          %181 = dma.done %s173, 64
        $region36: #{tpu_custom_call.1} parent=31 // pred_fallthru
          _
        // Predicated region
        $region37: #{tpu_custom_call.1} parent=31 // pred_check
          %p182 = pneg %p63
        $region38: #{tpu_custom_call.1} parent=31 // pred_check_branch
          %184 = sbr.rel (%p182) target = $region40
        $region39: #{tpu_custom_call.1} parent=31 // pred_region
          %186 = dma.done [#allocation6], 256
        $region40: #{tpu_custom_call.1} parent=31 // pred_fallthru
          _
        %s187 = sand.u32 %s29, 1
        %s188 = scalar_lea.sflag [#allocation3], %s187
        %s189 = sand.u32 %s29, 1
        %s190 = smul.addr %s189, 4
        %s191 = scalar_lea.vmem [#allocation2], %s190
        %p192 = pneg %p42
        %p193 = pneg %p39
        %p194 = pneg %p63
        %p195 = pneg %p60
        %p196 = pneg %p84
        %p197 = pneg %p81
        %p198 = pneg %p110
        %p199 = pneg %p107
        %s200 = sand.u32 %s97, 1
        %s201 = scalar_lea.sflag [#allocation4], %s200
        %s202 = sand.u32 %s97, 1
        %s203 = smul.addr %s202, 8
        %s204 = scalar_lea.vmem [#allocation7], %s203
        %v206 = vld [vmem:[%s176] sm:$0xf]
        %v207 = vld [vmem:[#allocation5] sm:$0xf]
        %v208 = vld [vmem:[#allocation5 + $0x4] sm:$0xf]
        %v209 = vld [vmem:[#allocation5 + $0x8] sm:$0xf]
        %v210 = vld [vmem:[#allocation5 + $0xc] sm:$0xf]
        %v211 = vld [vmem:[%s2] sm:$0x1]
        %v213 = vperm.slane %v211, 0
        %v219 = vunpack.c.l.b16 %v207
        %v220 = vunpack.c.l.b16 %v208
        %v221 = vunpack.c.l.b16 %v209
        %v222 = vunpack.c.l.b16 %v210
        %v223 = vpack.c.b16 %v220, %v219
        %v224 = vpack.c.b16 %v222, %v221
        %vm227 = vcmask 261120
        %v229 = vsel %vm227, %v206, 0
        %231 = vmatpush.bf16.msra.mxu0 0
        %232 = vmatpush.bf16.msra.mxu0 0
        %233 = vmatpush.bf16.msra.mxu0 0
        %234 = vmatpush.bf16.msra.mxu0 0
        %235 = vmatpush.bf16.msra.mxu0 0
        %236 = vmatpush.bf16.msra.mxu0 0
        %237 = vmatpush.bf16.msra.mxu0 %v224
        %238 = vmatpush.bf16.msra.mxu0 %v223
        %239 = vmatmul.bf16.gmra.mxu0 %v229
        %v240 = vpop.f32.mrf.mxu0
        %v241 = vadd.f32 %v213, %v240
        %v242 = vpop.f32.mrf.mxu0
        %243 = vdwg.mxu0
        %244 = vst [vmem:[%s204] sm:$0xff] %v241
        %s245 = sand.u32 %s97, 1
        %s246 = scalar_lea.sflag [#allocation4], %s245
        %s247 = sand.u32 %s97, 1
        %s248 = smul.addr %s247, 8
        %s249 = scalar_lea.vmem [#allocation7], %s248
        // Predicated region
        $region41: #{tpu_custom_call.1} parent=31 // pred_check
          %p250 = pneg %p107
        $region42: #{tpu_custom_call.1} parent=31 // pred_check_branch
          %252 = sbr.rel (%p250) target = $region44
        $region43: #{tpu_custom_call.1} parent=31 // pred_region
          %254 = vsyncadd %s246, 0
          %s255 = smul.addr %s21, 8
          %s256 = scalar_lea.hbm %s3, %s255
          %s258 = sshll.u32 %s249, 4
          %s259 = int_to_ptr.vmem [resolvable:$true] %s258
          %s260 = sshll.u32 %s256, 4
          %s261 = int_to_ptr.hbm [resolvable:$true] %s260
          %263 = dma.vmem_to_hbm [thread:$0]  %s259, 128, %s261, %s246
        $region44: #{tpu_custom_call.1} parent=31 // pred_fallthru
          _
      $region32: #{tpu_custom_call.1} parent=5 // pred_fallthru
        _
      %p264 = scmp.le.s32.totalorder 2, %s16
      // Predicated region
      $region45: #{tpu_custom_call.1} parent=5 // pred_check
        %p265 = pneg %p264
      $region46: #{tpu_custom_call.1} parent=5 // pred_check_branch
        %267 = sbr.rel (%p265) target = $region48
      $region47: #{tpu_custom_call.1} parent=5 // pred_region
        %s268 = ssub.s32 %s16, 2
        // Predicated region
        $region49: #{tpu_custom_call.1} parent=47 // pred_check
          %p269 = pneg %p113
        $region50: #{tpu_custom_call.1} parent=47 // pred_check_branch
          %271 = sbr.rel (%p269) target = $region52
        $region51: #{tpu_custom_call.1} parent=47 // pred_region
          %s272 = sand.u32 %s98, 1
          %s273 = scalar_lea.sflag [#allocation4], %s272
          %s274 = sand.u32 %s98, 1
          %s275 = smul.addr %s274, 8
          %s276 = scalar_lea.vmem [#allocation7], %s275
          %278 = dma.done %s273, 128
        $region52: #{tpu_custom_call.1} parent=47 // pred_fallthru
          _
      $region48: #{tpu_custom_call.1} parent=5 // pred_fallthru
        _
    $region6: #{tpu_custom_call.1} parent=1 // loop_footer
      %s20 = sadd.s32 1, %s16
    $region7: #{tpu_custom_call.1} parent=1 // loop_footer_branch
      %15 = sbr.rel target = $region3
    $region8: #{tpu_custom_call.1} parent=1 // loop_exit
      _
    %279 = vsyncpa [#allocation3], 1
    %s280 = scalar_lea.sflag [#allocation3], 1
    %281 = vsyncpa %s280, 1
    %282 = vsyncpa [#allocation6], 1
    %283 = vsyncpa [#allocation4], 1
    %s284 = scalar_lea.sflag [#allocation4], 1
    %285 = vsyncpa %s284, 1

</llo_original>
